<compile_context>
chip_gen: v7x
topology: tpu7x:2x2x1
jax: 0.10.0
libtpu: 0.0.40
codegen_flags: <defaults>
</compile_context>

<pallas_src>
import functools

import jax
import jax.numpy as jnp
from jax.experimental import pallas as pl
from jax.experimental.pallas import tpu as pltpu

_MIB = 1024 * 1024
_LANE = 128


def _round_up(v, m):
    return ((v + m - 1) // m) * m


def _pooler_kernel(has_end_ref, x_ref, vmask_ref, emask_ref, out_ref,
                   sum_acc, end_acc, max_acc, *, L, tl, masks_resident):
    # has_end_ref: SMEM [num_l] int32, 1 if the L tile contains any end token.
    # x_ref:       [tl, B, tf]       input tile (any float dtype)
    # vmask_ref:   [Lp or tl, B] f32 1.0 where NOT padded (zero-padded to Lp)
    # emask_ref:   [Lp or tl, B] f32 1.0 at end-token positions
    # out_ref:     [4, B, tf] slabs: 0=sum (mean numerator), 1=start, 2=end-sum, 3=max
    l = pl.program_id(1)
    nl = pl.num_programs(1)
    num_l_static = -(-L // tl)

    @pl.when(l == 0)
    def _init():
        sum_acc[...] = jnp.zeros_like(sum_acc)
        end_acc[...] = jnp.zeros_like(end_acc)
        max_acc[...] = jnp.full_like(max_acc, -jnp.inf)
        # start token: global row 0 lives in the first L tile
        out_ref[1, :, :] = x_ref[0, :, :].astype(out_ref.dtype)

    if masks_resident and num_l_static > 1:
        # Whole (padded) masks are VMEM-resident; slice out the current tile.
        start = pl.multiple_of(l * tl, 8)            # tl % 8 == 0 whenever num_l > 1
        vmask = vmask_ref[pl.ds(start, tl), :]
        emask = emask_ref[pl.ds(start, tl), :]
    else:
        vmask = vmask_ref[...]
        emask = emask_ref[...]

    def accumulate(x):
        v3 = vmask[:, :, None]                       # [tl, B, 1]
        xm = x * v3                                  # shared by sum & max paths
        sum_acc[...] += jnp.sum(xm, axis=0)          # [B, tf]
        # additive mask: valid rows -> x, padded rows -> -3e38 (the extra term
        # is the tiny [tl, B, 1] tensor, so this is 1 full-width add total)
        neg = (v3 - 1.0) * 3.0e38
        max_acc[...] = jnp.maximum(max_acc[...], jnp.max(xm + neg, axis=0))

        @pl.when(has_end_ref[l] != 0)                # skip tiles with no end token
        def _end():
            end_acc[...] += jnp.sum(x * emask[:, :, None], axis=0)

    x = x_ref[...].astype(jnp.float32)               # [tl, B, tf]

    if L % tl == 0:
        accumulate(x)
    else:
        # Tail guard only on the last (partial) tile: rows >= L hold undefined
        # data in the x block (the padded masks are already zero there, but
        # 0 * garbage could be NaN, so the x rows themselves must be zeroed).
        @pl.when(l < nl - 1)
        def _full_tile():
            accumulate(x)

        @pl.when(l == nl - 1)
        def _last_tile():
            row = l * tl + jax.lax.broadcasted_iota(jnp.int32, (tl, x.shape[1]), 0)
            accumulate(jnp.where((row < L)[:, :, None], x, 0.0))

    @pl.when(l == nl - 1)
    def _finalize():
        out_ref[0, :, :] = sum_acc[...].astype(out_ref.dtype)   # mean numerator
        out_ref[2, :, :] = end_acc[...].astype(out_ref.dtype)
        out_ref[3, :, :] = max_acc[...].astype(out_ref.dtype)


def _vmem_limit_bytes():
    # Generation-aware: ~54 MiB on v7x (64 MiB/TC), ~108 MiB on v5e/v6e (128 MiB).
    try:
        cap = pltpu.get_tpu_info().vmem_capacity_bytes
    except Exception:
        cap = 64 * _MIB                               # conservative fallback (v7x)
    return int(min(cap * 0.85, cap - 8 * _MIB))


def _choose_tiles(L, B, F, x_dtype):
    itemsize = jnp.dtype(x_dtype).itemsize
    sublane = max(8, 32 // max(1, itemsize))          # f32->8, bf16->16, int8->32
    vmem_limit = _vmem_limit_bytes()
    usable = int(vmem_limit * 0.8)                    # headroom under declared limit

    # Feature tile: lane-dense; prefer >= 2 blocks so the "parallel" F axis can
    # shard across both v7x TensorCores.
    tf = F
    if F % _LANE == 0 and F > _LANE:
        for cand in (512, 256, 128):
            if F % cand == 0 and F // cand >= 2:
                tf = cand
                break

    # Masks resident when small (Lp < 2L bound so the decision is tl-independent).
    resident_mask_bytes = 2 * _round_up(2 * L, 8) * _round_up(B, _LANE) * 4
    masks_resident = resident_mask_bytes <= 8 * _MIB

    def solve_rows(tf_):
        lane_tf = _round_up(tf_, _LANE)
        out_b = 2 * 4 * _round_up(B, sublane) * lane_tf * itemsize      # out block (dbl-buf)
        acc_b = 3 * _round_up(B, 8) * lane_tf * 4                        # f32 accumulators
        fixed = out_b + acc_b + (resident_mask_bytes if masks_resident else 0)
        per_row = 2 * _round_up(B, sublane) * lane_tf * itemsize         # x, double-buffered
        if not masks_resident:
            per_row += 2 * 2 * _round_up(B, _LANE) * 4                   # both masks, dbl-buf
        return max(0, (usable - fixed) // per_row)

    rows = solve_rows(tf)
    while rows < 8 and tf % _LANE == 0 and tf > _LANE:                   # large-B fallback
        tf //= 2
        rows = solve_rows(tf)
    rows = max(int(rows), 8)

    if rows >= L:
        tl = L
    else:
        tl = max(8, (rows // 8) * 8)
        # Prefer a tl that divides L so the partial-tile guard never compiles in.
        for d in range(min(rows, L), max(8, rows // 2) - 1, -1):
            if d % 8 == 0 and L % d == 0:
                tl = d
                break
    return tl, tf, masks_resident, vmem_limit


def mean_start_end_max_pooler(x, padding_mask, end_mask, *, _tile_override=None):
    """x: [L, B, F] float; padding_mask/end_mask: [L, B] bool. Returns [B, 4F]."""
    L, B, F = x.shape
    valid = jnp.logical_not(padding_mask).astype(jnp.float32)    # [L, B]
    endm = end_mask.astype(jnp.float32)                          # [L, B]

    tl, tf, masks_resident, vmem_limit = _choose_tiles(L, B, F, x.dtype)
    if _tile_override is not None:                               # testing hook
        tl, tf = _tile_override
    num_l = pl.cdiv(L, tl)
    num_f = F // tf
    Lp = num_l * tl

    # Zero-pad the (small, [L,B]) masks so no per-tile mask selects are needed.
    if Lp != L:
        valid_p = jnp.pad(valid, ((0, Lp - L), (0, 0)))
        endm_p = jnp.pad(endm, ((0, Lp - L), (0, 0)))
    else:
        valid_p, endm_p = valid, endm

    # Per-L-tile "contains an end token" flag -> SMEM via scalar prefetch.
    has_end = (jnp.sum(endm_p.reshape(num_l, tl, B), axis=(1, 2)) > 0.0).astype(jnp.int32)

    if masks_resident:
        mask_spec = pl.BlockSpec((Lp, B), lambda f, l, he: (0, 0))      # VMEM-resident
    else:
        mask_spec = pl.BlockSpec((tl, B), lambda f, l, he: (l, 0))      # streamed

    kernel = functools.partial(_pooler_kernel, L=L, tl=tl,
                               masks_resident=masks_resident)

    out4 = pl.pallas_call(
        kernel,
        out_shape=jax.ShapeDtypeStruct((4, B, F), x.dtype),
        grid_spec=pltpu.PrefetchScalarGridSpec(
            num_scalar_prefetch=1,
            grid=(num_f, num_l),                        # parallel F, reduction L last
            in_specs=[
                pl.BlockSpec((tl, B, tf), lambda f, l, he: (l, 0, f)),
                mask_spec,
                mask_spec,
            ],
            out_specs=pl.BlockSpec((4, B, tf), lambda f, l, he: (0, 0, f)),
            scratch_shapes=[
                pltpu.VMEM((B, tf), jnp.float32),       # sum accumulator
                pltpu.VMEM((B, tf), jnp.float32),       # end-sum accumulator
                pltpu.VMEM((B, tf), jnp.float32),       # max accumulator
            ],
        ),
        compiler_params=pltpu.CompilerParams(
            dimension_semantics=("parallel", "arbitrary"),
            vmem_limit_bytes=vmem_limit,
        ),
    )(has_end, x, valid_p, endm_p)

    # Exact mean division on the output-sized slab (0/0 -> nan, like torch).
    cnt = jnp.sum(valid, axis=0)                         # [B]
    mean = (out4[0].astype(jnp.float32) / cnt[:, None]).astype(x.dtype)
    # concat order matches torch.cat([mean, start, end_sum, max], dim=-1)
    return jnp.concatenate([mean, out4[1], out4[2], out4[3]], axis=-1)


def mean_start_end_max_pooler_ref(x, padding_mask, end_mask):
    # pure-JAX reference mirroring the PyTorch forward exactly
    valid = jnp.logical_not(padding_mask)[:, :, None].astype(x.dtype)
    endm = end_mask[:, :, None].astype(x.dtype)
    mean = jnp.sum(x * valid, axis=0) / jnp.sum(valid, axis=0)
    start = x[0]
    end_sum = jnp.sum(x * endm, axis=0)
    mx = jnp.max(jnp.where(padding_mask[:, :, None], -jnp.inf, x), axis=0)
    return jnp.concatenate([mean, start, end_sum, mx], axis=-1)


def _make_masks(L, lengths):
    pos = jnp.arange(L)[:, None]                         # [L, 1]
    padding_mask = pos >= lengths[None, :]               # [L, B] bool, True = pad
    end_mask = pos == (lengths - 1)[None, :]             # [L, B] bool, True = end tok
    return padding_mask, end_mask


if __name__ == "__main__":
    key = jax.random.PRNGKey(0)
    k1, k2 = jax.random.split(key)

    # Case 1: small shapes, single tile chosen automatically.
    L, B, F = 8, 2, 32
    x = jax.random.normal(k1, (L, B, F), dtype=jnp.float32)
    lengths = jnp.array([5, 7], dtype=jnp.int32)
    padding_mask, end_mask = _make_masks(L, lengths)

    out = jax.block_until_ready(mean_start_end_max_pooler(x, padding_mask, end_mask))
    ref = mean_start_end_max_pooler_ref(x, padding_mask, end_mask)
    assert out.shape == (B, 4 * F), out.shape
    assert jnp.allclose(out, ref, atol=1e-5, rtol=1e-5), (
        f"case1 mismatch: max abs err {jnp.max(jnp.abs(out - ref))}")

    # Case 2: forced multi-tile L with a partial tail tile — exercises the
    # accumulator sweep, the has_end gating and the last-tile-only x guard.
    L2, B2, F2 = 13, 2, 32
    x2 = jax.random.normal(k2, (L2, B2, F2), dtype=jnp.float32)
    lengths2 = jnp.array([5, 7], dtype=jnp.int32)
    pm2, em2 = _make_masks(L2, lengths2)

    out2 = jax.block_until_ready(
        mean_start_end_max_pooler(x2, pm2, em2, _tile_override=(8, F2)))
    ref2 = mean_start_end_max_pooler_ref(x2, pm2, em2)
    assert out2.shape == (B2, 4 * F2), out2.shape
    assert jnp.allclose(out2, ref2, atol=1e-5, rtol=1e-5), (
        f"case2 mismatch: max abs err {jnp.max(jnp.abs(out2 - ref2))}")

    print("KERNEL_OK")
</pallas_src>

<mosaic_0001>
module attributes {stable_mosaic.version = 11 : i64} {
  func.func @_pooler_kernel(%arg0: i32, %arg1: i32, %arg2: memref<1xi32, #tpu.memory_space<smem>>, %arg3: memref<8x2x32xf32, #tpu.memory_space<vmem>>, %arg4: memref<8x2xf32, #tpu.memory_space<vmem>>, %arg5: memref<8x2xf32, #tpu.memory_space<vmem>>, %arg6: memref<4x2x32xf32, #tpu.memory_space<vmem>>, %arg7: memref<2x32xf32, #tpu.memory_space<vmem>>, %arg8: memref<2x32xf32, #tpu.memory_space<vmem>>, %arg9: memref<2x32xf32, #tpu.memory_space<vmem>>) attributes {dimension_semantics = [#tpu.dimension_semantics<parallel>, #tpu.dimension_semantics<arbitrary>], iteration_bounds = array<i64: 1, 1>, scalar_prefetch = 1 : i64, scratch_operands = 3 : i64, tpu.core_type = #tpu.core_type<tc>, window_params = [{transform_indices = @transform_0, window_bounds = array<i64: 8, 2, 32>}, {pipeline_mode = #tpu.pipeline_mode<synchronous>, transform_indices = @transform_1, window_bounds = array<i64: 8, 2>}, {pipeline_mode = #tpu.pipeline_mode<synchronous>, transform_indices = @transform_2, window_bounds = array<i64: 8, 2>}, {transform_indices = @transform_3, window_bounds = array<i64: 4, 2, 32>}]} {
    %c0_i32 = arith.constant 0 : i32
    %0 = arith.cmpi eq, %arg1, %c0_i32 : i32
    %1 = arith.extui %0 : i1 to i32
    %c0_i32_0 = arith.constant 0 : i32
    %2 = arith.cmpi ne, %1, %c0_i32_0 : i32
    scf.if %2 {
      %cst_22 = arith.constant 0.000000e+00 : f32
      %31 = vector.broadcast %cst_22 : f32 to vector<2x32xf32>
      %c0_23 = arith.constant 0 : index
      %c0_24 = arith.constant 0 : index
      %32 = vector.load %arg7[%c0_23, %c0_24] : memref<2x32xf32, #tpu.memory_space<vmem>>, vector<2x32xf32>
      tpu.vector_store %arg7[%c0_23, %c0_24], %31 {strides = array<i32>} : memref<2x32xf32, #tpu.memory_space<vmem>>, vector<2x32xf32>,
      %cst_25 = arith.constant 0.000000e+00 : f32
      %33 = vector.broadcast %cst_25 : f32 to vector<2x32xf32>
      %c0_26 = arith.constant 0 : index
      %c0_27 = arith.constant 0 : index
      %34 = vector.load %arg8[%c0_26, %c0_27] : memref<2x32xf32, #tpu.memory_space<vmem>>, vector<2x32xf32>
      tpu.vector_store %arg8[%c0_26, %c0_27], %33 {strides = array<i32>} : memref<2x32xf32, #tpu.memory_space<vmem>>, vector<2x32xf32>,
      %cst_28 = arith.constant 0xFF800000 : f32
      %35 = vector.broadcast %cst_28 : f32 to vector<2x32xf32>
      %c0_29 = arith.constant 0 : index
      %c0_30 = arith.constant 0 : index
      %36 = vector.load %arg9[%c0_29, %c0_30] : memref<2x32xf32, #tpu.memory_space<vmem>>, vector<2x32xf32>
      tpu.vector_store %arg9[%c0_29, %c0_30], %35 {strides = array<i32>} : memref<2x32xf32, #tpu.memory_space<vmem>>, vector<2x32xf32>,
      %c0_31 = arith.constant 0 : index
      %c0_32 = arith.constant 0 : index
      %c0_33 = arith.constant 0 : index
      %37 = vector.load %arg3[%c0_31, %c0_32, %c0_33] : memref<8x2x32xf32, #tpu.memory_space<vmem>>, vector<1x2x32xf32>
      %38 = vector.shape_cast %37 : vector<1x2x32xf32> to vector<2x32xf32>
      %c1 = arith.constant 1 : index
      %c0_34 = arith.constant 0 : index
      %c0_35 = arith.constant 0 : index
      %39 = vector.load %arg6[%c1, %c0_34, %c0_35] : memref<4x2x32xf32, #tpu.memory_space<vmem>>, vector<1x2x32xf32>
      %40 = vector.shape_cast %39 : vector<1x2x32xf32> to vector<2x32xf32>
      %41 = vector.shape_cast %38 : vector<2x32xf32> to vector<1x2x32xf32>
      tpu.vector_store %arg6[%c1, %c0_34, %c0_35], %41 {strides = array<i32>} : memref<4x2x32xf32, #tpu.memory_space<vmem>>, vector<1x2x32xf32>,
    } else {
    }
    %c0 = arith.constant 0 : index
    %c0_1 = arith.constant 0 : index
    %3 = vector.load %arg4[%c0, %c0_1] : memref<8x2xf32, #tpu.memory_space<vmem>>, vector<8x2xf32>
    %c0_2 = arith.constant 0 : index
    %c0_3 = arith.constant 0 : index
    %4 = vector.load %arg5[%c0_2, %c0_3] : memref<8x2xf32, #tpu.memory_space<vmem>>, vector<8x2xf32>
    %c0_4 = arith.constant 0 : index
    %c0_5 = arith.constant 0 : index
    %c0_6 = arith.constant 0 : index
    %5 = vector.load %arg3[%c0_4, %c0_5, %c0_6] : memref<8x2x32xf32, #tpu.memory_space<vmem>>, vector<8x2x32xf32>
    %6 = vector.shape_cast %3 : vector<8x2xf32> to vector<8x2x1xf32>
    %7 = vector.broadcast %6 : vector<8x2x1xf32> to vector<8x2x32xf32>
    %8 = arith.mulf %5, %7 : vector<8x2x32xf32>
    %c0_7 = arith.constant 0 : index
    %c0_8 = arith.constant 0 : index
    %9 = vector.load %arg7[%c0_7, %c0_8] : memref<2x32xf32, #tpu.memory_space<vmem>>, vector<2x32xf32>
    %cst = arith.constant dense<0.000000e+00> : vector<2x32xf32>
    %10 = vector.multi_reduction <add>, %8, %cst [0] : vector<8x2x32xf32> to vector<2x32xf32>
    %11 = arith.addf %9, %10 : vector<2x32xf32>
    %c0_9 = arith.constant 0 : index
    %c0_10 = arith.constant 0 : index
    %12 = vector.load %arg7[%c0_9, %c0_10] : memref<2x32xf32, #tpu.memory_space<vmem>>, vector<2x32xf32>
    tpu.vector_store %arg7[%c0_9, %c0_10], %11 {strides = array<i32>} : memref<2x32xf32, #tpu.memory_space<vmem>>, vector<2x32xf32>,
    %cst_11 = arith.constant 1.000000e+00 : f32
    %13 = vector.broadcast %cst_11 : f32 to vector<8x2x1xf32>
    %14 = arith.subf %6, %13 : vector<8x2x1xf32>
    %cst_12 = arith.constant 3.000000e+38 : f32
    %15 = vector.broadcast %cst_12 : f32 to vector<8x2x1xf32>
    %16 = arith.mulf %14, %15 : vector<8x2x1xf32>
    %c0_13 = arith.constant 0 : index
    %c0_14 = arith.constant 0 : index
    %17 = vector.load %arg9[%c0_13, %c0_14] : memref<2x32xf32, #tpu.memory_space<vmem>>, vector<2x32xf32>
    %18 = vector.broadcast %16 : vector<8x2x1xf32> to vector<8x2x32xf32>
    %19 = arith.addf %8, %18 : vector<8x2x32xf32>
    %cst_15 = arith.constant dense<0xFF800000> : vector<2x32xf32>
    %20 = vector.multi_reduction <maximumf>, %19, %cst_15 [0] : vector<8x2x32xf32> to vector<2x32xf32>
    %21 = arith.maximumf %17, %20 : vector<2x32xf32>
    %c0_16 = arith.constant 0 : index
    %c0_17 = arith.constant 0 : index
    %22 = vector.load %arg9[%c0_16, %c0_17] : memref<2x32xf32, #tpu.memory_space<vmem>>, vector<2x32xf32>
    tpu.vector_store %arg9[%c0_16, %c0_17], %21 {strides = array<i32>} : memref<2x32xf32, #tpu.memory_space<vmem>>, vector<2x32xf32>,
    %23 = arith.index_cast %arg1 : i32 to index
    %24 = memref.load %arg2[%23] : memref<1xi32, #tpu.memory_space<smem>>
    %c0_i32_18 = arith.constant 0 : i32
    %25 = arith.cmpi ne, %24, %c0_i32_18 : i32
    %26 = arith.extui %25 : i1 to i32
    %c0_i32_19 = arith.constant 0 : i32
    %27 = arith.cmpi ne, %26, %c0_i32_19 : i32
    scf.if %27 {
      %c0_22 = arith.constant 0 : index
      %c0_23 = arith.constant 0 : index
      %31 = vector.load %arg8[%c0_22, %c0_23] : memref<2x32xf32, #tpu.memory_space<vmem>>, vector<2x32xf32>
      %32 = vector.shape_cast %4 : vector<8x2xf32> to vector<8x2x1xf32>
      %33 = vector.broadcast %32 : vector<8x2x1xf32> to vector<8x2x32xf32>
      %34 = arith.mulf %5, %33 : vector<8x2x32xf32>
      %cst_24 = arith.constant dense<0.000000e+00> : vector<2x32xf32>
      %35 = vector.multi_reduction <add>, %34, %cst_24 [0] : vector<8x2x32xf32> to vector<2x32xf32>
      %36 = arith.addf %31, %35 : vector<2x32xf32>
      %c0_25 = arith.constant 0 : index
      %c0_26 = arith.constant 0 : index
      %37 = vector.load %arg8[%c0_25, %c0_26] : memref<2x32xf32, #tpu.memory_space<vmem>>, vector<2x32xf32>
      tpu.vector_store %arg8[%c0_25, %c0_26], %36 {strides = array<i32>} : memref<2x32xf32, #tpu.memory_space<vmem>>, vector<2x32xf32>,
    } else {
    }
    %c0_i32_20 = arith.constant 0 : i32
    %28 = arith.cmpi eq, %arg1, %c0_i32_20 : i32
    %29 = arith.extui %28 : i1 to i32
    %c0_i32_21 = arith.constant 0 : i32
    %30 = arith.cmpi ne, %29, %c0_i32_21 : i32
    scf.if %30 {
      %c0_22 = arith.constant 0 : index
      %c0_23 = arith.constant 0 : index
      %31 = vector.load %arg7[%c0_22, %c0_23] : memref<2x32xf32, #tpu.memory_space<vmem>>, vector<2x32xf32>
      %c0_24 = arith.constant 0 : index
      %c0_25 = arith.constant 0 : index
      %c0_26 = arith.constant 0 : index
      %32 = vector.load %arg6[%c0_24, %c0_25, %c0_26] : memref<4x2x32xf32, #tpu.memory_space<vmem>>, vector<1x2x32xf32>
      %33 = vector.shape_cast %32 : vector<1x2x32xf32> to vector<2x32xf32>
      %34 = vector.shape_cast %31 : vector<2x32xf32> to vector<1x2x32xf32>
      tpu.vector_store %arg6[%c0_24, %c0_25, %c0_26], %34 {strides = array<i32>} : memref<4x2x32xf32, #tpu.memory_space<vmem>>, vector<1x2x32xf32>,
      %c0_27 = arith.constant 0 : index
      %c0_28 = arith.constant 0 : index
      %35 = vector.load %arg8[%c0_27, %c0_28] : memref<2x32xf32, #tpu.memory_space<vmem>>, vector<2x32xf32>
      %c2 = arith.constant 2 : index
      %c0_29 = arith.constant 0 : index
      %c0_30 = arith.constant 0 : index
      %36 = vector.load %arg6[%c2, %c0_29, %c0_30] : memref<4x2x32xf32, #tpu.memory_space<vmem>>, vector<1x2x32xf32>
      %37 = vector.shape_cast %36 : vector<1x2x32xf32> to vector<2x32xf32>
      %38 = vector.shape_cast %35 : vector<2x32xf32> to vector<1x2x32xf32>
      tpu.vector_store %arg6[%c2, %c0_29, %c0_30], %38 {strides = array<i32>} : memref<4x2x32xf32, #tpu.memory_space<vmem>>, vector<1x2x32xf32>,
      %c0_31 = arith.constant 0 : index
      %c0_32 = arith.constant 0 : index
      %39 = vector.load %arg9[%c0_31, %c0_32] : memref<2x32xf32, #tpu.memory_space<vmem>>, vector<2x32xf32>
      %c3 = arith.constant 3 : index
      %c0_33 = arith.constant 0 : index
      %c0_34 = arith.constant 0 : index
      %40 = vector.load %arg6[%c3, %c0_33, %c0_34] : memref<4x2x32xf32, #tpu.memory_space<vmem>>, vector<1x2x32xf32>
      %41 = vector.shape_cast %40 : vector<1x2x32xf32> to vector<2x32xf32>
      %42 = vector.shape_cast %39 : vector<2x32xf32> to vector<1x2x32xf32>
      tpu.vector_store %arg6[%c3, %c0_33, %c0_34], %42 {strides = array<i32>} : memref<4x2x32xf32, #tpu.memory_space<vmem>>, vector<1x2x32xf32>,
    } else {
    }
    return
  }
  func.func @transform_0(%arg0: i32, %arg1: i32, %arg2: memref<1xi32, #tpu.memory_space<smem>>) -> (i32, i32, i32) {
    %c0_i32 = arith.constant 0 : i32
    %c0_i32_0 = arith.constant 0 : i32
    return %arg1, %c0_i32, %arg0 : i32, i32, i32
  }
  func.func @transform_1(%arg0: i32, %arg1: i32, %arg2: memref<1xi32, #tpu.memory_space<smem>>) -> (i32, i32) {
    %c0_i32 = arith.constant 0 : i32
    %c0_i32_0 = arith.constant 0 : i32
    %c0_i32_1 = arith.constant 0 : i32
    return %c0_i32, %c0_i32_0 : i32, i32
  }
  func.func @transform_2(%arg0: i32, %arg1: i32, %arg2: memref<1xi32, #tpu.memory_space<smem>>) -> (i32, i32) {
    %c0_i32 = arith.constant 0 : i32
    %c0_i32_0 = arith.constant 0 : i32
    %c0_i32_1 = arith.constant 0 : i32
    return %c0_i32, %c0_i32_0 : i32, i32
  }
  func.func @transform_3(%arg0: i32, %arg1: i32, %arg2: memref<1xi32, #tpu.memory_space<smem>>) -> (i32, i32, i32) {
    %c0_i32 = arith.constant 0 : i32
    %c0_i32_0 = arith.constant 0 : i32
    %c0_i32_1 = arith.constant 0 : i32
    return %c0_i32, %c0_i32_0, %arg0 : i32, i32, i32
  }
}

</mosaic_0001>

<llo_original>
// kernel: tpu_custom_call.1
$region0: #{tpu_custom_call.1}
  #allocation0 [shape = 'u32[]', space=smem, size = 0x4, offset = 0x4, fixed_abs, tag = 'smem constant byte address 0x4 - core index']
  #allocation1 [shape = 'u32[144,128]{1,0:T(1,128)}', space=vmem, size = 0x12000, scoped, tag = 'internal scratch']
  #allocation2 [shape = 'f32[2,32]{1,0:T(2,128)}', space=vmem, size = 0x400, scoped, tag = 'scratch operand']
  #allocation3 [shape = 'f32[2,32]{1,0:T(2,128)}', space=vmem, size = 0x400, scoped, tag = 'scratch operand']
  #allocation4 [shape = 'f32[2,32]{1,0:T(2,128)}', space=vmem, size = 0x400, scoped, tag = 'scratch operand']
  #allocation5 [shape = 's32[1]{0}', space=sflag, size = 0x4, scoped, tag = 'scoped memory for tpu_custom_call.1']
  #allocation6 [shape = 's32[1]{0:T(128)S(6)}', space=smem, size = 0x200, scoped, tag = 'prefetched SMEM operand 0']
  %s0 = inlined_call_operand.<no memory space> [shape: s32[1], index: 0, kind: input, shape index: {}]
  %s1 = inlined_call_operand.vmem [shape: f32[8,2,32], index: 1, kind: input, shape index: {}]
  %s2 = inlined_call_operand.vmem [shape: f32[8,2], index: 2, kind: input, shape index: {}]
  %s3 = inlined_call_operand.vmem [shape: f32[8,2], index: 3, kind: input, shape index: {}]
  %s4 = inlined_call_operand.hbm [shape: f32[4,2,32], index: 4, kind: output, shape index: {}]
  %s5 = sld [smem:[#allocation0]]
  $region34: #{tpu_custom_call.1} parent=0
    _
  %s7 = ssub.s32 1, %s5
  %s8 = scalar_select 0, %s7, %s5
  %9 = sst [smem:[#allocation6]] %s0
  $region1: #{tpu_custom_call.1} parent=0
    #allocation7 [shape = 'u8[4096]{0}', space=vmem, size = 0x1000, scoped, tag = 'output window, operand 0, single buffered']
    #allocation8 [shape = 's32[1]{0}', space=sflag, size = 0x4, scoped, tag = 'scoped memory for tpu_custom_call.1']
    %10 = vsyncpa [#allocation8], 0
    // Predicated region
    $region2: #{tpu_custom_call.1} parent=1 // pred_check
      _
    $region3: #{tpu_custom_call.1} parent=1 // pred_check_branch
      %12 = sbr.rel (0) target = $region5
    $region4: #{tpu_custom_call.1} parent=1 // pred_region
      _
    $region5: #{tpu_custom_call.1} parent=1 // pred_fallthru
      _
    // Predicated region
    $region6: #{tpu_custom_call.1} parent=1 // pred_check
      _
    $region7: #{tpu_custom_call.1} parent=1 // pred_check_branch
      %14 = sbr.rel (0) target = $region9
    $region8: #{tpu_custom_call.1} parent=1 // pred_region
      _
    $region9: #{tpu_custom_call.1} parent=1 // pred_fallthru
      _
    // Predicated region
    $region10: #{tpu_custom_call.1} parent=1 // pred_check
      _
    $region11: #{tpu_custom_call.1} parent=1 // pred_check_branch
      %16 = sbr.rel (0) target = $region13
    $region12: #{tpu_custom_call.1} parent=1 // pred_region
      _
    $region13: #{tpu_custom_call.1} parent=1 // pred_fallthru
      _
    %p17 = scmp.eq.s32.totalorder 0, 0
    // Predicated region
    $region14: #{tpu_custom_call.1} parent=1 // pred_check
      %p18 = pneg %p17
    $region15: #{tpu_custom_call.1} parent=1 // pred_check_branch
      %20 = sbr.rel (%p18) target = $region17
    $region16: #{tpu_custom_call.1} parent=1 // pred_region
      %vm21 = vcmask 254976
      %22 = vst.msk [vmem:[#allocation2] sm:$0x3] %vm21, 0.0
      %23 = vst.msk [vmem:[#allocation3] sm:$0x3] %vm21, 0.0
      %24 = vst.msk [vmem:[#allocation4] sm:$0x3] %vm21, -inf
      %v25 = vld [vmem:[%s1] sm:$0x3]
      %s26 = scalar_lea.vmem [#allocation7], 2
      %27 = vst.msk [vmem:[%s26] sm:$0x3] %vm21, %v25
    $region17: #{tpu_custom_call.1} parent=1 // pred_fallthru
      _
    %v28 = vld [vmem:[%s2] sm:$0xff]
    %v29 = vld [vmem:[%s3] sm:$0xff]
    %v30 = vld [vmem:[%s1] sm:$0x3]
    %v31 = vld [vmem:[%s1 + $0x2] sm:$0x3]
    %v32 = vld [vmem:[%s1 + $0x4] sm:$0x3]
    %v33 = vld [vmem:[%s1 + $0x6] sm:$0x3]
    %v34 = vld [vmem:[%s1 + $0x8] sm:$0x3]
    %v35 = vld [vmem:[%s1 + $0xa] sm:$0x3]
    %v36 = vld [vmem:[%s1 + $0xc] sm:$0x3]
    %v37 = vld [vmem:[%s1 + $0xe] sm:$0x3]
    %v38 = vlaneseq
    %v39 = vshrl.u32 %v38, 7
    %v40 = vsub.s32 0, %v39
    %v41 = vrot.slane %v28, %v40
    %43 = vbcast.lane.b32.xlu0 %v41, 256
    %v44 = vpop.permute.xlu0 %43
    %v45 = vlaneseq
    %v46 = vshrl.u32 %v45, 7
    %v47 = vsub.s32 1, %v46
    %v48 = vrot.slane %v28, %v47
    %50 = vbcast.lane.b32.xlu0 %v48, 256
    %v51 = vpop.permute.xlu0 %50
    %v52 = vlaneseq
    %v53 = vshrl.u32 %v52, 7
    %v54 = vsub.s32 2, %v53
    %v55 = vrot.slane %v28, %v54
    %57 = vbcast.lane.b32.xlu0 %v55, 256
    %v58 = vpop.permute.xlu0 %57
    %v59 = vlaneseq
    %v60 = vshrl.u32 %v59, 7
    %v61 = vsub.s32 3, %v60
    %v62 = vrot.slane %v28, %v61
    %64 = vbcast.lane.b32.xlu0 %v62, 256
    %v65 = vpop.permute.xlu0 %64
    %v66 = vlaneseq
    %v67 = vshrl.u32 %v66, 7
    %v68 = vsub.s32 4, %v67
    %v69 = vrot.slane %v28, %v68
    %71 = vbcast.lane.b32.xlu0 %v69, 256
    %v72 = vpop.permute.xlu0 %71
    %v73 = vlaneseq
    %v74 = vshrl.u32 %v73, 7
    %v75 = vsub.s32 5, %v74
    %v76 = vrot.slane %v28, %v75
    %78 = vbcast.lane.b32.xlu0 %v76, 256
    %v79 = vpop.permute.xlu0 %78
    %v80 = vlaneseq
    %v81 = vshrl.u32 %v80, 7
    %v82 = vsub.s32 6, %v81
    %v83 = vrot.slane %v28, %v82
    %85 = vbcast.lane.b32.xlu0 %v83, 256
    %v86 = vpop.permute.xlu0 %85
    %v87 = vlaneseq
    %v88 = vshrl.u32 %v87, 7
    %v89 = vsub.s32 7, %v88
    %v90 = vrot.slane %v28, %v89
    %92 = vbcast.lane.b32.xlu0 %v90, 256
    %v93 = vpop.permute.xlu0 %92
    %v94 = vmul.f32 %v30, %v44
    %v95 = vmul.f32 %v31, %v51
    %v96 = vmul.f32 %v32, %v58
    %v97 = vmul.f32 %v33, %v65
    %v98 = vmul.f32 %v34, %v72
    %v99 = vmul.f32 %v35, %v79
    %v100 = vmul.f32 %v36, %v86
    %v101 = vmul.f32 %v37, %v93
    %v102 = vld [vmem:[#allocation2] sm:$0x3]
    %vm103 = vcmask 254976
    %v104 = vsel %vm103, %v94, 0.0
    %v105 = vsel %vm103, %v95, 0.0
    %v106 = vadd.f32 %v104, %v105
    %v107 = vsel %vm103, %v96, 0.0
    %v108 = vadd.f32 %v106, %v107
    %v109 = vsel %vm103, %v97, 0.0
    %v110 = vadd.f32 %v108, %v109
    %v111 = vsel %vm103, %v98, 0.0
    %v112 = vadd.f32 %v110, %v111
    %v113 = vsel %vm103, %v99, 0.0
    %v114 = vadd.f32 %v112, %v113
    %v115 = vsel %vm103, %v100, 0.0
    %v116 = vadd.f32 %v114, %v115
    %v117 = vsel %vm103, %v101, 0.0
    %v118 = vadd.f32 %v116, %v117
    %v119 = vadd.f32 %v102, %v118
    %120 = vst.msk [vmem:[#allocation2] sm:$0x3] %vm103, %v119
    %v121 = vsub.f32 %v44, 1.0
    %v122 = vsub.f32 %v51, 1.0
    %v123 = vsub.f32 %v58, 1.0
    %v124 = vsub.f32 %v65, 1.0
    %v125 = vsub.f32 %v72, 1.0
    %v126 = vsub.f32 %v79, 1.0
    %v127 = vsub.f32 %v86, 1.0
    %v128 = vsub.f32 %v93, 1.0
    %v129 = vmul.f32 %v121, 3e+38
    %v130 = vmul.f32 %v122, 3e+38
    %v131 = vmul.f32 %v123, 3e+38
    %v132 = vmul.f32 %v124, 3e+38
    %v133 = vmul.f32 %v125, 3e+38
    %v134 = vmul.f32 %v126, 3e+38
    %v135 = vmul.f32 %v127, 3e+38
    %v136 = vmul.f32 %v128, 3e+38
    %v137 = vld [vmem:[#allocation4] sm:$0x3]
    %v138 = vadd.f32 %v94, %v129
    %v139 = vadd.f32 %v95, %v130
    %v140 = vadd.f32 %v96, %v131
    %v141 = vadd.f32 %v97, %v132
    %v142 = vadd.f32 %v98, %v133
    %v143 = vadd.f32 %v99, %v134
    %v144 = vadd.f32 %v100, %v135
    %v145 = vadd.f32 %v101, %v136
    %v146 = vsel %vm103, %v138, -inf
    %v147 = vsel %vm103, %v139, -inf
    %v148 = vsel %vm103, %v140, -inf
    %v149 = vsel %vm103, %v141, -inf
    %v150 = vsel %vm103, %v142, -inf
    %v151 = vmax.f32 %v146, %v150
    %v152 = vsel %vm103, %v143, -inf
    %v153 = vmax.f32 %v147, %v152
    %v154 = vsel %vm103, %v144, -inf
    %v155 = vmax.f32 %v148, %v154
    %v156 = vsel %vm103, %v145, -inf
    %v157 = vmax.f32 %v149, %v156
    %v158 = vmax.f32 %v151, %v153
    %v159 = vmax.f32 %v155, %v157
    %v160 = vmax.f32 %v158, %v159
    %v161 = vmax.f32 %v137, %v160
    %162 = vst.msk [vmem:[#allocation4] sm:$0x3] %vm103, %v161
    %s163 = sld [smem:[#allocation6]]
    %p164 = scmp.ne.s32.totalorder %s163, 0
    // Predicated region
    $region18: #{tpu_custom_call.1} parent=1 // pred_check
      %p165 = pneg %p164
    $region19: #{tpu_custom_call.1} parent=1 // pred_check_branch
      %167 = sbr.rel (%p165) target = $region21
    $region20: #{tpu_custom_call.1} parent=1 // pred_region
      %v168 = vld [vmem:[#allocation3] sm:$0x3]
      %v169 = vlaneseq
      %v170 = vshrl.u32 %v169, 7
      %v171 = vsub.s32 0, %v170
      %v172 = vrot.slane %v29, %v171
      %174 = vbcast.lane.b32.xlu0 %v172, 256
      %v175 = vpop.permute.xlu0 %174
      %v176 = vlaneseq
      %v177 = vshrl.u32 %v176, 7
      %v178 = vsub.s32 1, %v177
      %v179 = vrot.slane %v29, %v178
      %181 = vbcast.lane.b32.xlu0 %v179, 256
      %v182 = vpop.permute.xlu0 %181
      %v183 = vlaneseq
      %v184 = vshrl.u32 %v183, 7
      %v185 = vsub.s32 2, %v184
      %v186 = vrot.slane %v29, %v185
      %188 = vbcast.lane.b32.xlu0 %v186, 256
      %v189 = vpop.permute.xlu0 %188
      %v190 = vlaneseq
      %v191 = vshrl.u32 %v190, 7
      %v192 = vsub.s32 3, %v191
      %v193 = vrot.slane %v29, %v192
      %195 = vbcast.lane.b32.xlu0 %v193, 256
      %v196 = vpop.permute.xlu0 %195
      %v197 = vlaneseq
      %v198 = vshrl.u32 %v197, 7
      %v199 = vsub.s32 4, %v198
      %v200 = vrot.slane %v29, %v199
      %202 = vbcast.lane.b32.xlu0 %v200, 256
      %v203 = vpop.permute.xlu0 %202
      %v204 = vlaneseq
      %v205 = vshrl.u32 %v204, 7
      %v206 = vsub.s32 5, %v205
      %v207 = vrot.slane %v29, %v206
      %209 = vbcast.lane.b32.xlu0 %v207, 256
      %v210 = vpop.permute.xlu0 %209
      %v211 = vlaneseq
      %v212 = vshrl.u32 %v211, 7
      %v213 = vsub.s32 6, %v212
      %v214 = vrot.slane %v29, %v213
      %216 = vbcast.lane.b32.xlu0 %v214, 256
      %v217 = vpop.permute.xlu0 %216
      %v218 = vlaneseq
      %v219 = vshrl.u32 %v218, 7
      %v220 = vsub.s32 7, %v219
      %v221 = vrot.slane %v29, %v220
      %223 = vbcast.lane.b32.xlu0 %v221, 256
      %v224 = vpop.permute.xlu0 %223
      %v225 = vmul.f32 %v30, %v175
      %v226 = vmul.f32 %v31, %v182
      %v227 = vmul.f32 %v32, %v189
      %v228 = vmul.f32 %v33, %v196
      %v229 = vmul.f32 %v34, %v203
      %v230 = vmul.f32 %v35, %v210
      %v231 = vmul.f32 %v36, %v217
      %v232 = vmul.f32 %v37, %v224
      %v233 = vsel %vm103, %v225, 0.0
      %v234 = vsel %vm103, %v226, 0.0
      %v235 = vadd.f32 %v233, %v234
      %v236 = vsel %vm103, %v227, 0.0
      %v237 = vadd.f32 %v235, %v236
      %v238 = vsel %vm103, %v228, 0.0
      %v239 = vadd.f32 %v237, %v238
      %v240 = vsel %vm103, %v229, 0.0
      %v241 = vadd.f32 %v239, %v240
      %v242 = vsel %vm103, %v230, 0.0
      %v243 = vadd.f32 %v241, %v242
      %v244 = vsel %vm103, %v231, 0.0
      %v245 = vadd.f32 %v243, %v244
      %v246 = vsel %vm103, %v232, 0.0
      %v247 = vadd.f32 %v245, %v246
      %v248 = vadd.f32 %v168, %v247
      %249 = vst.msk [vmem:[#allocation3] sm:$0x3] %vm103, %v248
    $region21: #{tpu_custom_call.1} parent=1 // pred_fallthru
      _
    // Predicated region
    $region22: #{tpu_custom_call.1} parent=1 // pred_check
      %p250 = pneg %p17
    $region23: #{tpu_custom_call.1} parent=1 // pred_check_branch
      %252 = sbr.rel (%p250) target = $region25
    $region24: #{tpu_custom_call.1} parent=1 // pred_region
      %v253 = vld [vmem:[#allocation2] sm:$0x3]
      %254 = vst.msk [vmem:[#allocation7] sm:$0x3] %vm103, %v253
      %v255 = vld [vmem:[#allocation3] sm:$0x3]
      %s256 = scalar_lea.vmem [#allocation7], 4
      %257 = vst.msk [vmem:[%s256] sm:$0x3] %vm103, %v255
      %v258 = vld [vmem:[#allocation4] sm:$0x3]
      %s259 = scalar_lea.vmem [#allocation7], 6
      %260 = vst.msk [vmem:[%s259] sm:$0x3] %vm103, %v258
    $region25: #{tpu_custom_call.1} parent=1 // pred_fallthru
      _
    // Predicated region
    $region26: #{tpu_custom_call.1} parent=1 // pred_check
      _
    $region27: #{tpu_custom_call.1} parent=1 // pred_check_branch
      %262 = sbr.rel (0) target = $region29
    $region28: #{tpu_custom_call.1} parent=1 // pred_region
      %s264 = ssub.s32 128, 128
      %265 = vsyncadd [#allocation8], %s264
      %s266 = sshll.u32 [#allocation7], 4
      %s267 = int_to_ptr.vmem [resolvable:$true] %s266
      %272 = dma.vmem_to_hbm [thread:$0]  %s267, 128, %s4, [#allocation8], 32, 32, 2
    $region29: #{tpu_custom_call.1} parent=1 // pred_fallthru
      _
    // Predicated region
    $region30: #{tpu_custom_call.1} parent=1 // pred_check
      _
    $region31: #{tpu_custom_call.1} parent=1 // pred_check_branch
      %274 = sbr.rel (0) target = $region33
    $region32: #{tpu_custom_call.1} parent=1 // pred_region
      %275 = dma.done [#allocation8], 128
    $region33: #{tpu_custom_call.1} parent=1 // pred_fallthru
      _
    %276 = vsyncpa [#allocation8], 1

</llo_original>
